<compile_context>
chip_gen: v5e
topology: v5e:2x2
jax: 0.10.0
libtpu: 0.0.40
codegen_flags: <defaults>
</compile_context>

<pallas_src>
import math

import jax
import jax.numpy as jnp
from jax.experimental import pallas as pl
from jax.experimental.pallas import tpu as pltpu

LANE = 128              # padded (lane-dense) output width for every layer's weights
SUBLANE = 8             # batch rows padded to a multiple of this
SMALL_BATCH = 512       # <= this many rows -> grid-less single-shot path
COMPUTE_DTYPE = jnp.bfloat16   # MXU-native weights/activations; accumulation in f32

_relu = lambda v: jnp.maximum(v, 0.0)
_ACTS = (_relu, _relu, jnp.tanh, _relu, _relu, jnp.tanh)   # matches nn.Sequential


def _round_up(v, m):
    return (v + m - 1) // m * m


def _make_kernel(k_dims, acts, out_dim):
    """Build the fused MLP kernel.

    x_ref: [TB, in_dim]     activation tile, unpadded lanes (cast to bf16 in-kernel)
    w_ref: [L, 128, 128]    packed bf16 weights, zero-padded, [in, out] layout
    b_ref: [L, 1, 128]      packed f32 biases, zero-padded
    o_ref: [TB, out_dim]    narrow output tile (last block dim == full array dim)
    """
    n_layers = len(k_dims)

    def kernel(x_ref, w_ref, b_ref, o_ref):
        h = x_ref[...].astype(COMPUTE_DTYPE)
        for l, (k_l, act) in enumerate(zip(k_dims, acts)):
            # Contract only over the k_l real rows of the padded slab
            # (k_l in {16,32,64}: sublane-aligned for bf16), N stays a
            # lane-dense 128.  Padded weight columns + zero bias lanes give
            # exactly-zero padded outputs, and the next layer's contraction is
            # sliced to its own k, so padding never leaks into real lanes.
            z = jnp.dot(h[:, :k_l], w_ref[l, :k_l, :],
                        preferred_element_type=jnp.float32) + b_ref[l]
            a = act(z)                                       # f32
            h = a if l == n_layers - 1 else a.astype(COMPUTE_DTYPE)
        o_ref[...] = h[:, :out_dim].astype(o_ref.dtype)

    return kernel


def pack_params(params):
    """Pack per-layer (W[in,out], b[1,out]) into zero-padded slabs ONCE.

    Weights -> bf16 [L,128,128]; biases -> f32 [L,1,128].
    Call at module-construction time; reuse the slabs for every forward.
    """
    n = len(params)
    w_pack = jnp.zeros((n, LANE, LANE), COMPUTE_DTYPE)
    b_pack = jnp.zeros((n, 1, LANE), jnp.float32)
    for l, (w, b) in enumerate(params):
        w_pack = w_pack.at[l, :w.shape[0], :w.shape[1]].set(w.astype(COMPUTE_DTYPE))
        b_pack = b_pack.at[l, :, :b.shape[1]].set(b.astype(jnp.float32))
    return w_pack, b_pack


def mlp2layers_tanh(x, w_pack, b_pack, dims, *, batch_tile=2048):
    """Forward pass.

    x:       [batch, dims[0]] float array.
    w_pack:  [6, 128, 128] bf16 slab from pack_params.
    b_pack:  [6, 1, 128]   f32 slab from pack_params.
    dims:    (in1, out1, out2, out3, out4, out5, out6).
    """
    batch, in_dim = x.shape
    assert in_dim == dims[0], "x feature dim must match dims[0]"
    k_dims = tuple(dims[:-1])            # per-layer contraction widths
    out_dim = dims[-1]
    n_layers = len(k_dims)

    kernel = _make_kernel(k_dims, _ACTS, out_dim)

    # Validate user-supplied tile: must be a positive multiple of the sublane.
    batch_tile = max(SUBLANE, _round_up(int(batch_tile), SUBLANE))

    use_grid = batch > SMALL_BATCH
    if use_grid:
        # Guarantee >= 2 grid steps (both v7x TensorCores get work), cap at
        # batch_tile so tiles stay pipeline-friendly on v5e/v6e.
        tb = min(batch_tile, _round_up(pl.cdiv(batch, 2), SUBLANE))
        batch_pad = _round_up(batch, tb)
    else:
        tb = batch_pad = max(SUBLANE, _round_up(batch, SUBLANE))

    # Rows-only padding (no lane padding in HBM); skipped entirely when the
    # batch already divides the tile.  Padded rows compute act(bias) junk but
    # are sliced off below.
    if batch_pad != batch:
        x_in = jnp.zeros((batch_pad, in_dim), x.dtype).at[:batch].set(x)
    else:
        x_in = x

    cost = pl.CostEstimate(
        flops=2 * batch_pad * sum(k * LANE for k in k_dims),
        transcendentals=2 * batch_pad * LANE,          # two tanh layers
        bytes_accessed=(x_in.dtype.itemsize * x_in.size
                        + w_pack.dtype.itemsize * w_pack.size
                        + b_pack.dtype.itemsize * b_pack.size
                        + 4 * batch_pad * out_dim),
    )
    out_shape = jax.ShapeDtypeStruct((batch_pad, out_dim), jnp.float32)

    if use_grid:
        out = pl.pallas_call(
            kernel,
            out_shape=out_shape,
            grid=(batch_pad // tb,),
            in_specs=[
                # x tile: last block dim == full array dim (32) -> legal, no lane pad.
                pl.BlockSpec((tb, in_dim), lambda i: (i, 0)),
                # Packed weights/biases: constant index_map -> VMEM-resident.
                pl.BlockSpec((n_layers, LANE, LANE), lambda i: (0, 0, 0)),
                pl.BlockSpec((n_layers, 1, LANE), lambda i: (0, 0, 0)),
            ],
            out_specs=pl.BlockSpec((tb, out_dim), lambda i: (i, 0)),
            compiler_params=pltpu.CompilerParams(
                dimension_semantics=("parallel",),
                # Covers v5e's 16 MiB default scoped VMEM with big tiles;
                # well under v7x's 64 MiB physical per-TC VMEM.
                vmem_limit_bytes=32 << 20),
            cost_estimate=cost,
        )(x_in, w_pack, b_pack)
    else:
        # Small batch: no grid, whole arrays VMEM-resident (3 input DMAs total).
        out = pl.pallas_call(
            kernel,
            out_shape=out_shape,
            in_specs=[pl.BlockSpec(memory_space=pltpu.MemorySpace.VMEM)] * 3,
            out_specs=pl.BlockSpec(memory_space=pltpu.MemorySpace.VMEM),
            cost_estimate=cost,
        )(x_in, w_pack, b_pack)

    return out if batch_pad == batch else out[:batch]


def init_params(key, dims):
    """Deterministic init mirroring the PyTorch module:
    - weights: xavier_uniform_
    - biases : PyTorch default Linear init, U(-1/sqrt(fan_in), 1/sqrt(fan_in))
    Weights returned transposed as [in, out]; biases as [1, out]; all f32 masters.
    """
    params = []
    for i in range(len(dims) - 1):
        fan_in, fan_out = dims[i], dims[i + 1]
        key, wk, bk = jax.random.split(key, 3)
        gain = math.sqrt(6.0 / (fan_in + fan_out))  # xavier_uniform bound
        w = jax.random.uniform(wk, (fan_in, fan_out), jnp.float32, -gain, gain)
        bbound = 1.0 / math.sqrt(fan_in)
        b = jax.random.uniform(bk, (1, fan_out), jnp.float32, -bbound, bbound)
        params.append((w, b))
    return params


def reference_forward_f32(x, params):
    h = x
    for (w, b), act in zip(params, _ACTS):
        h = act(h @ w + b)
    return h


def reference_forward_bf16(x, params):
    """Mirrors the kernel numerics: bf16 weights/activations, f32 accumulation,
    f32 bias-add + activation, last layer kept in f32."""
    n = len(params)
    h = x.astype(jnp.bfloat16)
    for l, ((w, b), act) in enumerate(zip(params, _ACTS)):
        z = jnp.dot(h, w.astype(jnp.bfloat16),
                    preferred_element_type=jnp.float32) + b
        a = act(z)
        h = a if l == n - 1 else a.astype(jnp.bfloat16)
    return h


if __name__ == "__main__":
    key = jax.random.PRNGKey(0)

    # MLP2LayersTanH(in_feature1=32, out1=64, out2=64, out3=32, out4=32, out5=16, out6=8)
    dims = (32, 64, 64, 32, 32, 16, 8)

    key, xkey = jax.random.split(key)
    params = init_params(key, dims)
    w_pack, b_pack = pack_params(params)      # packed ONCE, reused across calls

    # ---- Small-batch (grid-less) path ----
    batch = 8
    x = jax.random.normal(xkey, (batch, dims[0]), jnp.float32)
    out = jax.block_until_ready(mlp2layers_tanh(x, w_pack, b_pack, dims))
    ref_bf16 = reference_forward_bf16(x, params)
    ref_f32 = reference_forward_f32(x, params)
    assert out.shape == (batch, dims[-1])
    assert jnp.allclose(out, ref_bf16, atol=2e-3, rtol=2e-3), "mismatch vs bf16 ref (small batch)"
    assert jnp.allclose(out, ref_f32, atol=1e-1, rtol=1e-1), "mismatch vs f32 ref (small batch)"

    # ---- Batch-tiled ("parallel" grid) path: 2 grid steps of 512 rows ----
    key, xkey2 = jax.random.split(key)
    x_big = jax.random.normal(xkey2, (1024, dims[0]), jnp.float32)
    out_big = jax.block_until_ready(mlp2layers_tanh(x_big, w_pack, b_pack, dims))
    ref_big_bf16 = reference_forward_bf16(x_big, params)
    assert out_big.shape == (1024, dims[-1])
    assert jnp.allclose(out_big, ref_big_bf16, atol=2e-3, rtol=2e-3), "mismatch (tiled batch)"

    print("KERNEL_OK")
</pallas_src>

<mosaic_0001>
module attributes {stable_mosaic.version = 11 : i64} {
  func.func @kernel(%arg0: memref<8x32xf32, #tpu.memory_space<vmem>>, %arg1: memref<6x128x128xbf16, #tpu.memory_space<vmem>>, %arg2: memref<6x1x128xf32, #tpu.memory_space<vmem>>, %arg3: memref<8x8xf32, #tpu.memory_space<vmem>>) attributes {dimension_semantics = [], scalar_prefetch = 0 : i64, scratch_operands = 0 : i64, tpu.core_type = #tpu.core_type<tc>} {
    %c0 = arith.constant 0 : index
    %c0_0 = arith.constant 0 : index
    %0 = vector.load %arg0[%c0, %c0_0] : memref<8x32xf32, #tpu.memory_space<vmem>>, vector<8x32xf32>
    %1 = arith.truncf %0 : vector<8x32xf32> to vector<8x32xbf16>
    %c0_1 = arith.constant 0 : index
    %c0_2 = arith.constant 0 : index
    %c0_3 = arith.constant 0 : index
    %2 = vector.load %arg1[%c0_1, %c0_2, %c0_3] : memref<6x128x128xbf16, #tpu.memory_space<vmem>>, vector<1x32x128xbf16>
    %3 = vector.shape_cast %2 : vector<1x32x128xbf16> to vector<32x128xbf16>
    %cst = arith.constant dense<0.000000e+00> : vector<8x128xf32>
    %4 = tpu.matmul %1, %3, %cst {dimension_numbers = #tpu.dot_dimension_numbers<[1], [0], [0], [1], [0, 0, 1, 1], [], []>} : vector<8x32xbf16>, vector<32x128xbf16>, vector<8x128xf32> -> vector<8x128xf32>
    %c0_4 = arith.constant 0 : index
    %c0_5 = arith.constant 0 : index
    %c0_6 = arith.constant 0 : index
    %5 = vector.load %arg2[%c0_4, %c0_5, %c0_6] : memref<6x1x128xf32, #tpu.memory_space<vmem>>, vector<1x1x128xf32>
    %6 = vector.shape_cast %5 : vector<1x1x128xf32> to vector<1x128xf32>
    %7 = vector.broadcast %6 : vector<1x128xf32> to vector<8x128xf32>
    %8 = arith.addf %4, %7 : vector<8x128xf32>
    %cst_7 = arith.constant 0.000000e+00 : f32
    %9 = vector.broadcast %cst_7 : f32 to vector<8x128xf32>
    %10 = arith.maximumf %8, %9 : vector<8x128xf32>
    %11 = arith.truncf %10 : vector<8x128xf32> to vector<8x128xbf16>
    %12 = vector.extract_strided_slice %11 {offsets = [0, 0], sizes = [8, 64], strides = [1, 1]} : vector<8x128xbf16> to vector<8x64xbf16>
    %c1 = arith.constant 1 : index
    %c0_8 = arith.constant 0 : index
    %c0_9 = arith.constant 0 : index
    %13 = vector.load %arg1[%c1, %c0_8, %c0_9] : memref<6x128x128xbf16, #tpu.memory_space<vmem>>, vector<1x64x128xbf16>
    %14 = vector.shape_cast %13 : vector<1x64x128xbf16> to vector<64x128xbf16>
    %cst_10 = arith.constant dense<0.000000e+00> : vector<8x128xf32>
    %15 = tpu.matmul %12, %14, %cst_10 {dimension_numbers = #tpu.dot_dimension_numbers<[1], [0], [0], [1], [0, 0, 1, 1], [], []>} : vector<8x64xbf16>, vector<64x128xbf16>, vector<8x128xf32> -> vector<8x128xf32>
    %c1_11 = arith.constant 1 : index
    %c0_12 = arith.constant 0 : index
    %c0_13 = arith.constant 0 : index
    %16 = vector.load %arg2[%c1_11, %c0_12, %c0_13] : memref<6x1x128xf32, #tpu.memory_space<vmem>>, vector<1x1x128xf32>
    %17 = vector.shape_cast %16 : vector<1x1x128xf32> to vector<1x128xf32>
    %18 = vector.broadcast %17 : vector<1x128xf32> to vector<8x128xf32>
    %19 = arith.addf %15, %18 : vector<8x128xf32>
    %cst_14 = arith.constant 0.000000e+00 : f32
    %20 = vector.broadcast %cst_14 : f32 to vector<8x128xf32>
    %21 = arith.maximumf %19, %20 : vector<8x128xf32>
    %22 = arith.truncf %21 : vector<8x128xf32> to vector<8x128xbf16>
    %23 = vector.extract_strided_slice %22 {offsets = [0, 0], sizes = [8, 64], strides = [1, 1]} : vector<8x128xbf16> to vector<8x64xbf16>
    %c2 = arith.constant 2 : index
    %c0_15 = arith.constant 0 : index
    %c0_16 = arith.constant 0 : index
    %24 = vector.load %arg1[%c2, %c0_15, %c0_16] : memref<6x128x128xbf16, #tpu.memory_space<vmem>>, vector<1x64x128xbf16>
    %25 = vector.shape_cast %24 : vector<1x64x128xbf16> to vector<64x128xbf16>
    %cst_17 = arith.constant dense<0.000000e+00> : vector<8x128xf32>
    %26 = tpu.matmul %23, %25, %cst_17 {dimension_numbers = #tpu.dot_dimension_numbers<[1], [0], [0], [1], [0, 0, 1, 1], [], []>} : vector<8x64xbf16>, vector<64x128xbf16>, vector<8x128xf32> -> vector<8x128xf32>
    %c2_18 = arith.constant 2 : index
    %c0_19 = arith.constant 0 : index
    %c0_20 = arith.constant 0 : index
    %27 = vector.load %arg2[%c2_18, %c0_19, %c0_20] : memref<6x1x128xf32, #tpu.memory_space<vmem>>, vector<1x1x128xf32>
    %28 = vector.shape_cast %27 : vector<1x1x128xf32> to vector<1x128xf32>
    %29 = vector.broadcast %28 : vector<1x128xf32> to vector<8x128xf32>
    %30 = arith.addf %26, %29 : vector<8x128xf32>
    %31 = math.tanh %30 : vector<8x128xf32>
    %32 = arith.truncf %31 : vector<8x128xf32> to vector<8x128xbf16>
    %33 = vector.extract_strided_slice %32 {offsets = [0, 0], sizes = [8, 32], strides = [1, 1]} : vector<8x128xbf16> to vector<8x32xbf16>
    %c3 = arith.constant 3 : index
    %c0_21 = arith.constant 0 : index
    %c0_22 = arith.constant 0 : index
    %34 = vector.load %arg1[%c3, %c0_21, %c0_22] : memref<6x128x128xbf16, #tpu.memory_space<vmem>>, vector<1x32x128xbf16>
    %35 = vector.shape_cast %34 : vector<1x32x128xbf16> to vector<32x128xbf16>
    %cst_23 = arith.constant dense<0.000000e+00> : vector<8x128xf32>
    %36 = tpu.matmul %33, %35, %cst_23 {dimension_numbers = #tpu.dot_dimension_numbers<[1], [0], [0], [1], [0, 0, 1, 1], [], []>} : vector<8x32xbf16>, vector<32x128xbf16>, vector<8x128xf32> -> vector<8x128xf32>
    %c3_24 = arith.constant 3 : index
    %c0_25 = arith.constant 0 : index
    %c0_26 = arith.constant 0 : index
    %37 = vector.load %arg2[%c3_24, %c0_25, %c0_26] : memref<6x1x128xf32, #tpu.memory_space<vmem>>, vector<1x1x128xf32>
    %38 = vector.shape_cast %37 : vector<1x1x128xf32> to vector<1x128xf32>
    %39 = vector.broadcast %38 : vector<1x128xf32> to vector<8x128xf32>
    %40 = arith.addf %36, %39 : vector<8x128xf32>
    %cst_27 = arith.constant 0.000000e+00 : f32
    %41 = vector.broadcast %cst_27 : f32 to vector<8x128xf32>
    %42 = arith.maximumf %40, %41 : vector<8x128xf32>
    %43 = arith.truncf %42 : vector<8x128xf32> to vector<8x128xbf16>
    %44 = vector.extract_strided_slice %43 {offsets = [0, 0], sizes = [8, 32], strides = [1, 1]} : vector<8x128xbf16> to vector<8x32xbf16>
    %c4 = arith.constant 4 : index
    %c0_28 = arith.constant 0 : index
    %c0_29 = arith.constant 0 : index
    %45 = vector.load %arg1[%c4, %c0_28, %c0_29] : memref<6x128x128xbf16, #tpu.memory_space<vmem>>, vector<1x32x128xbf16>
    %46 = vector.shape_cast %45 : vector<1x32x128xbf16> to vector<32x128xbf16>
    %cst_30 = arith.constant dense<0.000000e+00> : vector<8x128xf32>
    %47 = tpu.matmul %44, %46, %cst_30 {dimension_numbers = #tpu.dot_dimension_numbers<[1], [0], [0], [1], [0, 0, 1, 1], [], []>} : vector<8x32xbf16>, vector<32x128xbf16>, vector<8x128xf32> -> vector<8x128xf32>
    %c4_31 = arith.constant 4 : index
    %c0_32 = arith.constant 0 : index
    %c0_33 = arith.constant 0 : index
    %48 = vector.load %arg2[%c4_31, %c0_32, %c0_33] : memref<6x1x128xf32, #tpu.memory_space<vmem>>, vector<1x1x128xf32>
    %49 = vector.shape_cast %48 : vector<1x1x128xf32> to vector<1x128xf32>
    %50 = vector.broadcast %49 : vector<1x128xf32> to vector<8x128xf32>
    %51 = arith.addf %47, %50 : vector<8x128xf32>
    %cst_34 = arith.constant 0.000000e+00 : f32
    %52 = vector.broadcast %cst_34 : f32 to vector<8x128xf32>
    %53 = arith.maximumf %51, %52 : vector<8x128xf32>
    %54 = arith.truncf %53 : vector<8x128xf32> to vector<8x128xbf16>
    %55 = vector.extract_strided_slice %54 {offsets = [0, 0], sizes = [8, 16], strides = [1, 1]} : vector<8x128xbf16> to vector<8x16xbf16>
    %c5 = arith.constant 5 : index
    %c0_35 = arith.constant 0 : index
    %c0_36 = arith.constant 0 : index
    %56 = vector.load %arg1[%c5, %c0_35, %c0_36] : memref<6x128x128xbf16, #tpu.memory_space<vmem>>, vector<1x16x128xbf16>
    %57 = vector.shape_cast %56 : vector<1x16x128xbf16> to vector<16x128xbf16>
    %cst_37 = arith.constant dense<0.000000e+00> : vector<8x128xf32>
    %58 = tpu.matmul %55, %57, %cst_37 {dimension_numbers = #tpu.dot_dimension_numbers<[1], [0], [0], [1], [0, 0, 1, 1], [], []>} : vector<8x16xbf16>, vector<16x128xbf16>, vector<8x128xf32> -> vector<8x128xf32>
    %c5_38 = arith.constant 5 : index
    %c0_39 = arith.constant 0 : index
    %c0_40 = arith.constant 0 : index
    %59 = vector.load %arg2[%c5_38, %c0_39, %c0_40] : memref<6x1x128xf32, #tpu.memory_space<vmem>>, vector<1x1x128xf32>
    %60 = vector.shape_cast %59 : vector<1x1x128xf32> to vector<1x128xf32>
    %61 = vector.broadcast %60 : vector<1x128xf32> to vector<8x128xf32>
    %62 = arith.addf %58, %61 : vector<8x128xf32>
    %63 = math.tanh %62 : vector<8x128xf32>
    %64 = vector.extract_strided_slice %63 {offsets = [0, 0], sizes = [8, 8], strides = [1, 1]} : vector<8x128xf32> to vector<8x8xf32>
    %c0_41 = arith.constant 0 : index
    %c0_42 = arith.constant 0 : index
    %65 = vector.load %arg3[%c0_41, %c0_42] : memref<8x8xf32, #tpu.memory_space<vmem>>, vector<8x8xf32>
    tpu.vector_store %arg3[%c0_41, %c0_42], %64 {strides = array<i32>} : memref<8x8xf32, #tpu.memory_space<vmem>>, vector<8x8xf32>,
    return
  }
}

</mosaic_0001>

<llo_original>
// kernel: tpu_custom_call.1
$region0: #{tpu_custom_call.1}
  #allocation0 [shape = 'u32[]', space=smem, size = 0x4, offset = 0x4, fixed_abs, tag = 'smem constant byte address 0x4 - core index']
  #allocation1 [shape = 'u32[72,128]{1,0:T(1,128)}', space=vmem, size = 0x9000, scoped, tag = 'internal scratch']
  %s0 = inlined_call_operand.hbm [shape: f32[8,32], index: 0, kind: input, shape index: {}]
  %s1 = inlined_call_operand.hbm [shape: bf16[6,128,128], index: 1, kind: input, shape index: {}]
  %s2 = inlined_call_operand.hbm [shape: f32[6,1,128], index: 2, kind: input, shape index: {}]
  %s3 = inlined_call_operand.hbm [shape: f32[8,8], index: 3, kind: output, shape index: {}]
  %s4 = sld [smem:[#allocation0]]
  $region34: #{tpu_custom_call.1} parent=0
    _
  %s6 = ssub.s32 1, %s4
  %s7 = scalar_select 0, %s6, %s4
  $region1: #{tpu_custom_call.1} parent=0
    #allocation2 [shape = 'u8[4096]{0}', space=vmem, size = 0x1000, scoped, tag = 'input window, operand 0, single buffered']
    #allocation3 [shape = 's32[1]{0}', space=sflag, size = 0x4, scoped, tag = 'scoped memory for tpu_custom_call.1']
    #allocation4 [shape = 's32[1]{0}', space=sflag, size = 0x4, scoped, tag = 'scoped memory for tpu_custom_call.1']
    #allocation5 [shape = 'u8[196608]{0}', space=vmem, size = 0x30000, scoped, tag = 'input window, operand 1, single buffered']
    #allocation6 [shape = 's32[1]{0}', space=sflag, size = 0x4, scoped, tag = 'scoped memory for tpu_custom_call.1']
    #allocation7 [shape = 'u8[3072]{0}', space=vmem, size = 0xc00, scoped, tag = 'input window, operand 2, single buffered']
    #allocation8 [shape = 'u8[4096]{0}', space=vmem, size = 0x1000, scoped, tag = 'output window, operand 0, single buffered']
    %8 = vsyncpa [#allocation3], 0
    %9 = vsyncpa [#allocation6], 0
    %10 = vsyncpa [#allocation4], 0
    // Predicated region
    $region2: #{tpu_custom_call.1} parent=1 // pred_check
      _
    $region3: #{tpu_custom_call.1} parent=1 // pred_check_branch
      %12 = sbr.rel (0) target = $region5
    $region4: #{tpu_custom_call.1} parent=1 // pred_region
      %14 = vsyncadd [#allocation3], 0
      %s16 = sshll.u32 %s0, 4
      %s17 = int_to_ptr.hbm [resolvable:$true] %s16
      %s18 = sshll.u32 [#allocation2], 4
      %s19 = int_to_ptr.vmem [resolvable:$true] %s18
      %21 = dma.hbm_to_vmem [thread:$0]  %s17, 128, %s19, [#allocation3]
    $region5: #{tpu_custom_call.1} parent=1 // pred_fallthru
      _
    // Predicated region
    $region6: #{tpu_custom_call.1} parent=1 // pred_check
      _
    $region7: #{tpu_custom_call.1} parent=1 // pred_check_branch
      %23 = sbr.rel (0) target = $region9
    $region8: #{tpu_custom_call.1} parent=1 // pred_region
      %25 = vsyncadd [#allocation6], 0
      %s26 = sshll.u32 %s1, 4
      %s27 = int_to_ptr.hbm [resolvable:$true] %s26
      %s28 = sshll.u32 [#allocation5], 4
      %s29 = int_to_ptr.vmem [resolvable:$true] %s28
      %34 = dma.hbm_to_vmem [thread:$0]  %s27, 6144, %s29, [#allocation6], 64, 64, 4
    $region9: #{tpu_custom_call.1} parent=1 // pred_fallthru
      _
    // Predicated region
    $region10: #{tpu_custom_call.1} parent=1 // pred_check
      _
    $region11: #{tpu_custom_call.1} parent=1 // pred_check_branch
      %36 = sbr.rel (0) target = $region13
    $region12: #{tpu_custom_call.1} parent=1 // pred_region
      %38 = vsyncadd [#allocation6], 0
      %s39 = sshll.u32 %s2, 4
      %s40 = int_to_ptr.hbm [resolvable:$true] %s39
      %s41 = sshll.u32 [#allocation7], 4
      %s42 = int_to_ptr.vmem [resolvable:$true] %s41
      %47 = dma.hbm_to_vmem [thread:$0]  %s40, 96, %s42, [#allocation6], 16, 16, 1
    $region13: #{tpu_custom_call.1} parent=1 // pred_fallthru
      _
    // Predicated region
    $region14: #{tpu_custom_call.1} parent=1 // pred_check
      _
    $region15: #{tpu_custom_call.1} parent=1 // pred_check_branch
      %49 = sbr.rel (0) target = $region17
    $region16: #{tpu_custom_call.1} parent=1 // pred_region
      %51 = dma.done [#allocation3], 128
    $region17: #{tpu_custom_call.1} parent=1 // pred_fallthru
      _
    // Predicated region
    $region18: #{tpu_custom_call.1} parent=1 // pred_check
      _
    $region19: #{tpu_custom_call.1} parent=1 // pred_check_branch
      %53 = sbr.rel (0) target = $region21
    $region20: #{tpu_custom_call.1} parent=1 // pred_region
      %55 = dma.done [#allocation6], 6144
    $region21: #{tpu_custom_call.1} parent=1 // pred_fallthru
      _
    // Predicated region
    $region22: #{tpu_custom_call.1} parent=1 // pred_check
      _
    $region23: #{tpu_custom_call.1} parent=1 // pred_check_branch
      %57 = sbr.rel (0) target = $region25
    $region24: #{tpu_custom_call.1} parent=1 // pred_region
      %59 = dma.done [#allocation6], 96
    $region25: #{tpu_custom_call.1} parent=1 // pred_fallthru
      _
    %v61 = vld [vmem:[#allocation2] sm:$0xff]
    %v62 = vpack.c.bf16 %v61, %v61
    %v63 = vld [vmem:[#allocation5] sm:$0xf]
    %v64 = vld [vmem:[#allocation5 + $0x4] sm:$0xf]
    %v65 = vld [vmem:[#allocation5 + $0x8] sm:$0xf]
    %v66 = vld [vmem:[#allocation5 + $0xc] sm:$0xf]
    %v67 = vld [vmem:[#allocation7] sm:$0x1]
    %v69 = vperm.slane %v67, 0
    %v75 = vunpack.c.l.b16 %v63
    %v76 = vunpack.c.l.b16 %v64
    %v77 = vunpack.c.l.b16 %v65
    %v78 = vunpack.c.l.b16 %v66
    %v79 = vpack.c.b16 %v76, %v75
    %v80 = vpack.c.b16 %v78, %v77
    %vm83 = vcmask 261120
    %v85 = vsel %vm83, %v62, 0
    %87 = vmatpush.bf16.msra.mxu0 0
    %88 = vmatpush.bf16.msra.mxu0 0
    %89 = vmatpush.bf16.msra.mxu0 0
    %90 = vmatpush.bf16.msra.mxu0 0
    %91 = vmatpush.bf16.msra.mxu0 0
    %92 = vmatpush.bf16.msra.mxu0 0
    %93 = vmatpush.bf16.msra.mxu0 %v80
    %94 = vmatpush.bf16.msra.mxu0 %v79
    %95 = vmatmul.bf16.gmra.mxu0 %v85
    %v96 = vpop.f32.mrf.mxu0
    %v97 = vadd.f32 %v69, %v96
    %v98 = vpop.f32.mrf.mxu0
    %99 = vdwg.mxu0
    %v100 = vmax.f32 %v97, 0.0
    %v101 = vpack.c.bf16 %v100, %v100
    %s102 = scalar_lea.vmem [#allocation5], 64
    %v103 = vld [vmem:[%s102] sm:$0xf]
    %v104 = vld [vmem:[%s102 + $0x4] sm:$0xf]
    %v105 = vld [vmem:[%s102 + $0x8] sm:$0xf]
    %v106 = vld [vmem:[%s102 + $0xc] sm:$0xf]
    %v107 = vld [vmem:[%s102 + $0x10] sm:$0xf]
    %v108 = vld [vmem:[%s102 + $0x14] sm:$0xf]
    %v109 = vld [vmem:[%s102 + $0x18] sm:$0xf]
    %v110 = vld [vmem:[%s102 + $0x1c] sm:$0xf]
    %s111 = scalar_lea.vmem [#allocation7], 1
    %v112 = vld [vmem:[%s111] sm:$0x1]
    %v114 = vperm.slane %v112, 0
    %v124 = vunpack.c.l.b16 %v103
    %v125 = vunpack.c.l.b16 %v104
    %v126 = vunpack.c.l.b16 %v105
    %v127 = vunpack.c.l.b16 %v106
    %v128 = vunpack.c.l.b16 %v107
    %v129 = vunpack.c.l.b16 %v108
    %v130 = vunpack.c.l.b16 %v109
    %v131 = vunpack.c.l.b16 %v110
    %v132 = vpack.c.b16 %v125, %v124
    %v133 = vpack.c.b16 %v127, %v126
    %v134 = vpack.c.b16 %v129, %v128
    %v135 = vpack.c.b16 %v131, %v130
    %vm140 = vcmask 523264
    %v142 = vsel %vm140, %v101, 0
    %144 = vmatpush.bf16.msra.mxu0 0
    %145 = vmatpush.bf16.msra.mxu0 0
    %146 = vmatpush.bf16.msra.mxu0 0
    %147 = vmatpush.bf16.msra.mxu0 0
    %148 = vmatpush.bf16.msra.mxu0 %v135
    %149 = vmatpush.bf16.msra.mxu0 %v134
    %150 = vmatpush.bf16.msra.mxu0 %v133
    %151 = vmatpush.bf16.msra.mxu0 %v132
    %152 = vmatmul.bf16.gmra.mxu0 %v142
    %v153 = vpop.f32.mrf.mxu0
    %v154 = vadd.f32 %v114, %v153
    %v155 = vpop.f32.mrf.mxu0
    %156 = vdwg.mxu0
    %v157 = vmax.f32 %v154, 0.0
    %v158 = vpack.c.bf16 %v157, %v157
    %s159 = scalar_lea.vmem [#allocation5], 128
    %v160 = vld [vmem:[%s159] sm:$0xf]
    %v161 = vld [vmem:[%s159 + $0x4] sm:$0xf]
    %v162 = vld [vmem:[%s159 + $0x8] sm:$0xf]
    %v163 = vld [vmem:[%s159 + $0xc] sm:$0xf]
    %v164 = vld [vmem:[%s159 + $0x10] sm:$0xf]
    %v165 = vld [vmem:[%s159 + $0x14] sm:$0xf]
    %v166 = vld [vmem:[%s159 + $0x18] sm:$0xf]
    %v167 = vld [vmem:[%s159 + $0x1c] sm:$0xf]
    %s168 = scalar_lea.vmem [#allocation7], 2
    %v169 = vld [vmem:[%s168] sm:$0x1]
    %v171 = vperm.slane %v169, 0
    %v181 = vunpack.c.l.b16 %v160
    %v182 = vunpack.c.l.b16 %v161
    %v183 = vunpack.c.l.b16 %v162
    %v184 = vunpack.c.l.b16 %v163
    %v185 = vunpack.c.l.b16 %v164
    %v186 = vunpack.c.l.b16 %v165
    %v187 = vunpack.c.l.b16 %v166
    %v188 = vunpack.c.l.b16 %v167
    %v189 = vpack.c.b16 %v182, %v181
    %v190 = vpack.c.b16 %v184, %v183
    %v191 = vpack.c.b16 %v186, %v185
    %v192 = vpack.c.b16 %v188, %v187
    %v198 = vsel %vm140, %v158, 0
    %200 = vmatpush.bf16.msra.mxu0 0
    %201 = vmatpush.bf16.msra.mxu0 0
    %202 = vmatpush.bf16.msra.mxu0 0
    %203 = vmatpush.bf16.msra.mxu0 0
    %204 = vmatpush.bf16.msra.mxu0 %v192
    %205 = vmatpush.bf16.msra.mxu0 %v191
    %206 = vmatpush.bf16.msra.mxu0 %v190
    %207 = vmatpush.bf16.msra.mxu0 %v189
    %208 = vmatmul.bf16.gmra.mxu0 %v198
    %v209 = vpop.f32.mrf.mxu0
    %v210 = vadd.f32 %v171, %v209
    %v211 = vpop.f32.mrf.mxu0
    %212 = vdwg.mxu0
    %v213 = vtanh.pop %v210
    %v214 = vpack.c.bf16 %v213, %v213
    %s215 = scalar_lea.vmem [#allocation5], 192
    %v216 = vld [vmem:[%s215] sm:$0xf]
    %v217 = vld [vmem:[%s215 + $0x4] sm:$0xf]
    %v218 = vld [vmem:[%s215 + $0x8] sm:$0xf]
    %v219 = vld [vmem:[%s215 + $0xc] sm:$0xf]
    %s220 = scalar_lea.vmem [#allocation7], 3
    %v221 = vld [vmem:[%s220] sm:$0x1]
    %v223 = vperm.slane %v221, 0
    %v229 = vunpack.c.l.b16 %v216
    %v230 = vunpack.c.l.b16 %v217
    %v231 = vunpack.c.l.b16 %v218
    %v232 = vunpack.c.l.b16 %v219
    %v233 = vpack.c.b16 %v230, %v229
    %v234 = vpack.c.b16 %v232, %v231
    %v238 = vsel %vm83, %v214, 0
    %240 = vmatpush.bf16.msra.mxu0 0
    %241 = vmatpush.bf16.msra.mxu0 0
    %242 = vmatpush.bf16.msra.mxu0 0
    %243 = vmatpush.bf16.msra.mxu0 0
    %244 = vmatpush.bf16.msra.mxu0 0
    %245 = vmatpush.bf16.msra.mxu0 0
    %246 = vmatpush.bf16.msra.mxu0 %v234
    %247 = vmatpush.bf16.msra.mxu0 %v233
    %248 = vmatmul.bf16.gmra.mxu0 %v238
    %v249 = vpop.f32.mrf.mxu0
    %v250 = vadd.f32 %v223, %v249
    %v251 = vpop.f32.mrf.mxu0
    %252 = vdwg.mxu0
    %v253 = vmax.f32 %v250, 0.0
    %v254 = vpack.c.bf16 %v253, %v253
    %s255 = scalar_lea.vmem [#allocation5], 256
    %v256 = vld [vmem:[%s255] sm:$0xf]
    %v257 = vld [vmem:[%s255 + $0x4] sm:$0xf]
    %v258 = vld [vmem:[%s255 + $0x8] sm:$0xf]
    %v259 = vld [vmem:[%s255 + $0xc] sm:$0xf]
    %s260 = scalar_lea.vmem [#allocation7], 4
    %v261 = vld [vmem:[%s260] sm:$0x1]
    %v263 = vperm.slane %v261, 0
    %v269 = vunpack.c.l.b16 %v256
    %v270 = vunpack.c.l.b16 %v257
    %v271 = vunpack.c.l.b16 %v258
    %v272 = vunpack.c.l.b16 %v259
    %v273 = vpack.c.b16 %v270, %v269
    %v274 = vpack.c.b16 %v272, %v271
    %v278 = vsel %vm83, %v254, 0
    %280 = vmatpush.bf16.msra.mxu0 0
    %281 = vmatpush.bf16.msra.mxu0 0
    %282 = vmatpush.bf16.msra.mxu0 0
    %283 = vmatpush.bf16.msra.mxu0 0
    %284 = vmatpush.bf16.msra.mxu0 0
    %285 = vmatpush.bf16.msra.mxu0 0
    %286 = vmatpush.bf16.msra.mxu0 %v274
    %287 = vmatpush.bf16.msra.mxu0 %v273
    %288 = vmatmul.bf16.gmra.mxu0 %v278
    %v289 = vpop.f32.mrf.mxu0
    %v290 = vadd.f32 %v263, %v289
    %v291 = vpop.f32.mrf.mxu0
    %292 = vdwg.mxu0
    %v293 = vmax.f32 %v290, 0.0
    %v294 = vpack.c.bf16 %v293, %v293
    %s295 = scalar_lea.vmem [#allocation5], 320
    %v296 = vld [vmem:[%s295] sm:$0xf]
    %v297 = vld [vmem:[%s295 + $0x4] sm:$0xf]
    %s298 = scalar_lea.vmem [#allocation7], 5
    %v299 = vld [vmem:[%s298] sm:$0x1]
    %v301 = vperm.slane %v299, 0
    %v305 = vunpack.c.l.b16 %v296
    %v306 = vunpack.c.l.b16 %v297
    %v307 = vpack.c.b16 %v306, %v305
    %vm309 = vcmask 130048
    %v311 = vsel %vm309, %v294, 0
    %313 = vmatpush.bf16.msra.mxu0 0
    %314 = vmatpush.bf16.msra.mxu0 0
    %315 = vmatpush.bf16.msra.mxu0 0
    %316 = vmatpush.bf16.msra.mxu0 0
    %317 = vmatpush.bf16.msra.mxu0 0
    %318 = vmatpush.bf16.msra.mxu0 0
    %319 = vmatpush.bf16.msra.mxu0 0
    %320 = vmatpush.bf16.msra.mxu0 %v307
    %321 = vmatmul.bf16.gmra.mxu0 %v311
    %v322 = vpop.f32.mrf.mxu0
    %v323 = vadd.f32 %v301, %v322
    %v324 = vpop.f32.mrf.mxu0
    %325 = vdwg.mxu0
    %v326 = vtanh.pop %v323
    %vm327 = vcmask 64512
    %328 = vst.msk [vmem:[#allocation8] sm:$0xff] %vm327, %v326
    // Predicated region
    $region26: #{tpu_custom_call.1} parent=1 // pred_check
      _
    $region27: #{tpu_custom_call.1} parent=1 // pred_check_branch
      %330 = sbr.rel (0) target = $region29
    $region28: #{tpu_custom_call.1} parent=1 // pred_region
      %332 = vsyncadd [#allocation4], 0
      %s334 = sshll.u32 [#allocation8], 4
      %s335 = int_to_ptr.vmem [resolvable:$true] %s334
      %s336 = sshll.u32 %s3, 4
      %s337 = int_to_ptr.hbm [resolvable:$true] %s336
      %339 = dma.vmem_to_hbm [thread:$0]  %s335, 128, %s337, [#allocation4]
    $region29: #{tpu_custom_call.1} parent=1 // pred_fallthru
      _
    // Predicated region
    $region30: #{tpu_custom_call.1} parent=1 // pred_check
      _
    $region31: #{tpu_custom_call.1} parent=1 // pred_check_branch
      %341 = sbr.rel (0) target = $region33
    $region32: #{tpu_custom_call.1} parent=1 // pred_region
      %343 = dma.done [#allocation4], 128
    $region33: #{tpu_custom_call.1} parent=1 // pred_fallthru
      _
    %344 = vsyncpa [#allocation3], 1
    %345 = vsyncpa [#allocation6], 1
    %346 = vsyncpa [#allocation4], 1

</llo_original>
